<compile_context>
chip_gen: v7x
topology: tpu7x:2x2x1
jax: 0.10.0
libtpu: 0.0.40
codegen_flags: <defaults>
</compile_context>

<pallas_src>
import jax
import jax.numpy as jnp
from jax.experimental import pallas as pl
from jax.experimental.pallas import tpu as pltpu


def _copy_kernel(x_ref, o_ref):
    # Lane-dense identity copy of one (TB, TF) tile; pure unmasked vld/vst
    # (masked only on a ragged last block, if any).
    o_ref[...] = x_ref[...]


def _pick_tile(dim, unit, max_tile):
    """Tile size for `dim`: the largest multiple of `unit` that is
    <= min(dim, max_tile), preferring a nearby exact divisor of `dim`
    (avoids a ragged, masked last block). Never exceeds max_tile, so it can
    never blow the VMEM budget; raggedness is handled by the cdiv grid.
    If dim <= unit the full dim is returned (a legal full-extent block)."""
    if dim <= unit:
        return dim
    hi = max(unit, min(int(max_tile), dim))
    best = (hi // unit) * unit
    probe = best
    for _ in range(64):  # short search for an exact divisor
        if probe < unit:
            break
        if dim % probe == 0:
            return probe
        probe -= unit
    return best


def _vmem_capacity_bytes():
    """Physical VMEM of the current generation (128 MiB v5e/v6e, 64 MiB v7x),
    with a conservative fallback if the query is unavailable."""
    try:
        cap = int(pltpu.get_tpu_info().vmem_capacity_bytes)
        if cap > 0:
            return cap
    except Exception:
        pass
    return 64 * 1024 * 1024


def flatten(x):
    """Module-equivalent forward: (B, ...) -> (B, prod(rest)).

    Standalone flatten is metadata-only, so this is just a reshape — no
    pallas_call, no HBM traffic. Use flatten_pallas() only when flatten must
    act as a kernel fusion point."""
    return jnp.reshape(x, (x.shape[0], -1))


def flatten_pallas(x):
    """Pallas copy-kernel version of flatten, kept as a fusion point."""
    B = x.shape[0]
    flat = 1
    for d in x.shape[1:]:
        flat *= d

    # Free, metadata-only reshape so the kernel sees lane-dense 2D tiles.
    x2d = jnp.reshape(x, (B, flat))

    dtype_bytes = jnp.dtype(x.dtype).itemsize
    # Sublane-group height: 8 rows for 4-byte dtypes, 16 for 2-byte, 32 for 1.
    sublane = max(8, 32 // max(dtype_bytes, 1))

    # Generation-aware budgets: ~3/8 of physical VMEM for the four block
    # buffers (in + out, double buffered), scoped limit raised to ~3/4.
    #   v5e/v6e (128 MiB): 48 MiB of buffers (12 MiB/block), 96 MiB limit.
    #   v7x     ( 64 MiB): 24 MiB of buffers ( 6 MiB/block), 48 MiB limit.
    vmem_cap = _vmem_capacity_bytes()
    buf_budget = (3 * vmem_cap) // 8
    vmem_limit = (3 * vmem_cap) // 4
    block_budget = buf_budget // 4  # bytes for one (tb, tf) block

    # Lane tile first (multiple of 128, keeping >= one sublane group of rows)...
    max_tf = max(128, block_budget // (sublane * dtype_bytes))
    tf = _pick_tile(flat, 128, max_tf)
    # ...then grow the row tile to fill the per-block budget.
    max_tb = max(sublane, block_budget // max(tf * dtype_bytes, 1))
    tb = _pick_tile(B, sublane, max_tb)

    nb = pl.cdiv(B, tb)
    nf = pl.cdiv(flat, tf)

    # Put the axis with the most grid steps first so v7x megacore sharding
    # always has >= 2 steps to split across its two TensorCores.
    if nf >= nb:
        grid = (nf, nb)
        index_map = lambda j, i: (i, j)
    else:
        grid = (nb, nf)
        index_map = lambda i, j: (i, j)

    spec = pl.BlockSpec((tb, tf), index_map)

    return pl.pallas_call(
        _copy_kernel,
        out_shape=jax.ShapeDtypeStruct((B, flat), x.dtype),
        grid_spec=pltpu.PrefetchScalarGridSpec(
            num_scalar_prefetch=0,
            grid=grid,
            in_specs=[spec],
            out_specs=spec,
        ),
        # Flatten never changes byte order: let the output reuse the input
        # buffer (free when the caller donates the input).
        input_output_aliases={0: 0},
        # Pure mem-bound copy: 0 flops, 2 * B * flat * dtype_bytes of HBM.
        cost_estimate=pl.CostEstimate(
            flops=0,
            transcendentals=0,
            bytes_accessed=2 * B * flat * dtype_bytes,
        ),
        compiler_params=pltpu.CompilerParams(
            dimension_semantics=("parallel", "parallel"),
            vmem_limit_bytes=int(vmem_limit),
        ),
    )(x2d)


if __name__ == "__main__":
    key = jax.random.PRNGKey(0)
    # Small NCHW input consistent with the module's forward.
    x = jax.random.normal(key, (2, 4, 16, 16), dtype=jnp.float32)

    # Reference: plain reshape (== torch .view on a contiguous tensor).
    ref = jnp.reshape(x, (x.shape[0], -1))

    # 1) Module-equivalent fast path (metadata-only, no kernel).
    out_fast = flatten(x)
    jax.block_until_ready(out_fast)
    assert out_fast.shape == (2, 4 * 16 * 16), out_fast.shape
    assert jnp.array_equal(out_fast, ref), "fast-path mismatch vs reference"

    # 2) Pallas kernel path (fusion point) — must match exactly as well.
    out_kernel = flatten_pallas(x)
    jax.block_until_ready(out_kernel)
    assert out_kernel.shape == (2, 4 * 16 * 16), out_kernel.shape
    assert jnp.array_equal(out_kernel, ref), "pallas kernel mismatch vs reference"

    print("KERNEL_OK")
</pallas_src>

<mosaic_0001>
module attributes {stable_mosaic.version = 11 : i64} {
  func.func @_copy_kernel(%arg0: i32, %arg1: i32, %arg2: memref<2x1024xf32, #tpu.memory_space<vmem>>, %arg3: memref<2x1024xf32, #tpu.memory_space<vmem>>) attributes {dimension_semantics = [#tpu.dimension_semantics<parallel>, #tpu.dimension_semantics<parallel>], iteration_bounds = array<i64: 1, 1>, scalar_prefetch = 0 : i64, scratch_operands = 0 : i64, tpu.core_type = #tpu.core_type<tc>, window_params = [{transform_indices = @transform_0, window_bounds = array<i64: 2, 1024>}, {transform_indices = @transform_1, window_bounds = array<i64: 2, 1024>}]} {
    %c0 = arith.constant 0 : index
    %c0_0 = arith.constant 0 : index
    %0 = vector.load %arg2[%c0, %c0_0] : memref<2x1024xf32, #tpu.memory_space<vmem>>, vector<2x1024xf32>
    %c0_1 = arith.constant 0 : index
    %c0_2 = arith.constant 0 : index
    %1 = vector.load %arg3[%c0_1, %c0_2] : memref<2x1024xf32, #tpu.memory_space<vmem>>, vector<2x1024xf32>
    tpu.vector_store %arg3[%c0_1, %c0_2], %0 {strides = array<i32>} : memref<2x1024xf32, #tpu.memory_space<vmem>>, vector<2x1024xf32>,
    return
  }
  func.func @transform_0(%arg0: i32, %arg1: i32) -> (i32, i32) {
    %c0_i32 = arith.constant 0 : i32
    return %arg1, %arg0 : i32, i32
  }
  func.func @transform_1(%arg0: i32, %arg1: i32) -> (i32, i32) {
    %c0_i32 = arith.constant 0 : i32
    return %arg1, %arg0 : i32, i32
  }
}

</mosaic_0001>

<llo_original>
// kernel: tpu_custom_call.1
$region0: #{tpu_custom_call.1}
  #allocation0 [shape = 'u32[]', space=smem, size = 0x4, offset = 0x4, fixed_abs, tag = 'smem constant byte address 0x4 - core index']
  #allocation1 [shape = 'u32[144,128]{1,0:T(1,128)}', space=vmem, size = 0x12000, scoped, tag = 'internal scratch']
  %s0 = inlined_call_operand.hbm [shape: f32[2,1024], index: 0, kind: input, shape index: {}, may-alias: {0,1}]
  %s1 = inlined_call_operand.hbm [shape: f32[2,1024], index: 1, kind: output, shape index: {}, may-alias: {0,1}]
  %s2 = sld [smem:[#allocation0]]
  $region18: #{tpu_custom_call.1} parent=0
    _
  %s4 = ssub.s32 1, %s2
  %s5 = scalar_select 0, %s4, %s2
  $region1: #{tpu_custom_call.1} parent=0
    #allocation2 [shape = 'u8[8192]{0}', space=vmem, size = 0x2000, scoped, tag = 'input window, operand 0, single buffered']
    #allocation3 [shape = 's32[1]{0}', space=sflag, size = 0x4, scoped, tag = 'scoped memory for tpu_custom_call.1']
    #allocation4 [shape = 's32[1]{0}', space=sflag, size = 0x4, scoped, tag = 'scoped memory for tpu_custom_call.1']
    #allocation5 [shape = 'u8[8192]{0}', space=vmem, size = 0x2000, scoped, tag = 'output window, operand 0, single buffered']
    %6 = vsyncpa [#allocation3], 0
    %7 = vsyncpa [#allocation4], 0
    // Predicated region
    $region2: #{tpu_custom_call.1} parent=1 // pred_check
      _
    $region3: #{tpu_custom_call.1} parent=1 // pred_check_branch
      %9 = sbr.rel (0) target = $region5
    $region4: #{tpu_custom_call.1} parent=1 // pred_region
      %s11 = ssub.s32 256, 256
      %12 = vsyncadd [#allocation3], %s11
      %s14 = sshll.u32 [#allocation2], 4
      %s15 = int_to_ptr.vmem [resolvable:$true] %s14
      %17 = dma.hbm_to_vmem [thread:$0]  %s0, 256, %s15, [#allocation3]
    $region5: #{tpu_custom_call.1} parent=1 // pred_fallthru
      _
    // Predicated region
    $region6: #{tpu_custom_call.1} parent=1 // pred_check
      _
    $region7: #{tpu_custom_call.1} parent=1 // pred_check_branch
      %19 = sbr.rel (0) target = $region9
    $region8: #{tpu_custom_call.1} parent=1 // pred_region
      %20 = dma.done [#allocation3], 256
    $region9: #{tpu_custom_call.1} parent=1 // pred_fallthru
      _
    %v21 = vld [vmem:[#allocation2] sm:$0xff]
    %v22 = vld [vmem:[#allocation2 + $0x8] sm:$0xff]
    %23 = vst [vmem:[#allocation5] sm:$0xff] %v21
    %24 = vst [vmem:[#allocation5 + $0x8] sm:$0xff] %v22
    // Predicated region
    $region10: #{tpu_custom_call.1} parent=1 // pred_check
      _
    $region11: #{tpu_custom_call.1} parent=1 // pred_check_branch
      %26 = sbr.rel (0) target = $region13
    $region12: #{tpu_custom_call.1} parent=1 // pred_region
      %s28 = ssub.s32 256, 256
      %29 = vsyncadd [#allocation4], %s28
      %s31 = sshll.u32 [#allocation5], 4
      %s32 = int_to_ptr.vmem [resolvable:$true] %s31
      %34 = dma.vmem_to_hbm [thread:$0]  %s32, 256, %s1, [#allocation4]
    $region13: #{tpu_custom_call.1} parent=1 // pred_fallthru
      _
    // Predicated region
    $region14: #{tpu_custom_call.1} parent=1 // pred_check
      _
    $region15: #{tpu_custom_call.1} parent=1 // pred_check_branch
      %36 = sbr.rel (0) target = $region17
    $region16: #{tpu_custom_call.1} parent=1 // pred_region
      %37 = dma.done [#allocation4], 256
    $region17: #{tpu_custom_call.1} parent=1 // pred_fallthru
      _
    %38 = vsyncpa [#allocation3], 1
    %39 = vsyncpa [#allocation4], 1

</llo_original>
